<compile_context>
chip_gen: v6e
topology: v6e:2x2x1
jax: 0.10.0
libtpu: 0.0.40
codegen_flags: <defaults>
</compile_context>

<pallas_src>
import jax
import jax.numpy as jnp
from jax.experimental import pallas as pl
from jax.experimental.pallas import tpu as pltpu

EPS = 1e-5  # PyTorch BatchNorm2d default eps


def _vmem_budget_bytes():
    """Per-generation scoped-VMEM request (leaves headroom under physical)."""
    try:
        cap = int(pltpu.get_tpu_info().vmem_capacity_bytes)
    except Exception:
        cap = 64 << 20            # conservative fallback (v7x per-TC physical)
    return int(min(cap * 3 // 5, 80 << 20))


# ----------------------------------------------------------------------------
# Tiny parameter fold (pure XLA, ~300 flops): propagate h_pre = A @ x + d
# through [LinearR2 + BatchNorm(batch stats)] x 5, then the final 1x1 conv.
# Exact because var(a.x + d) = a^T Cov(x) a and mean(a.x + d) = a.mu + d.
# Moments arrive centered about `shift` for numerical stability.
# ----------------------------------------------------------------------------
def _fold_affine(shift, s9, count, params):
    w1, wr, b, g, be, wo = params
    s1 = s9[:3] / count                                      # E[x - shift]
    mu = shift + s1                                          # E[x]
    p = s9[3:] / count                                       # E[(x-s)(x-s)^T]
    m2c = jnp.stack([jnp.stack([p[0], p[1], p[2]]),
                     jnp.stack([p[1], p[3], p[4]]),
                     jnp.stack([p[2], p[4], p[5]])])
    cov = m2c - jnp.outer(s1, s1)                            # Cov(x)

    a_mat = w1                                               # (c, 3)
    d_vec = b[0][:, 0]                                       # (c,)
    for l in range(5):
        if l > 0:
            a_mat = wr[l - 1] @ a_mat
            d_vec = wr[l - 1] @ d_vec + b[l][:, 0]
        mean = a_mat @ mu + d_vec
        var = jnp.einsum('ij,jk,ik->i', a_mat, cov, a_mat)
        scale = g[l][:, 0] * jax.lax.rsqrt(var + EPS)
        a_mat = scale[:, None] * a_mat
        d_vec = scale * (d_vec - mean) + be[l][:, 0]
    a_row = (wo @ a_mat)[0]                                  # (3,)
    b0 = wo @ d_vec                                          # (1,)
    return jnp.concatenate([a_row, b0]).astype(jnp.float32)  # (4,)


# ----------------------------------------------------------------------------
# Pallas forward
# ----------------------------------------------------------------------------
def cdepde_forward(x_nchw, params, conf):
    # Affine collapse is exact only with the PDE modules disabled and dropout
    # as inference-identity.
    assert tuple(conf['components']) == (0, 0, 0, 0), "PDE modules unsupported"

    n, cin, h, w = x_nchw.shape
    assert cin == 3  # module hardcodes 3 input channels
    hw = h * w

    budget = _vmem_budget_bytes()
    # pass-2 footprint ~ 32 B / pixel / grid step (double-buffered 3ch in +
    # 1ch out, f32); keep ~25% headroom vs the requested limit.
    target_px = max(8 * 128, budget // 40)

    # --- layout: NCHW -> (N, 3, T, LANE) via free, contiguous reshapes only ---
    lane = next((l for l in (512, 256, 128) if hw % l == 0), None)
    if lane is None:
        # TODO(synk): odd spatial sizes still pay one zero-pad copy of x; the
        # in-kernel element mask keeps the math exact, only the extra HBM
        # read/write of the pad copy is unoptimized.
        lane = 128
        hwp = pl.cdiv(hw, lane) * lane
        x_flat = jnp.pad(x_nchw.reshape(n, cin, hw),
                         ((0, 0), (0, 0), (0, hwp - hw)))
    else:
        hwp = hw
        x_flat = x_nchw.reshape(n, cin, hw)

    t_rows = hwp // lane
    sub_cap = max(8, (target_px // lane) // 8 * 8)
    sub = t_rows if t_rows <= sub_cap else sub_cap
    grid_t = pl.cdiv(t_rows, sub)
    need_mask = (t_rows % sub != 0) or (hwp != hw)
    x4 = x_flat.reshape(n, cin, t_rows, lane)

    # Dual-TC (v7x) utilisation for pass 1 when the batch axis is degenerate:
    # split the pixel-tile axis into a parallel factor of 2 (even split only,
    # so no fully-OOB blocks exist; only the globally-last tile is ragged).
    p_split = 2 if (n == 1 and grid_t >= 4 and grid_t % 2 == 0) else 1
    t_inner = grid_t // p_split

    # Per-channel pre-shift (mean over a small pixel prefix): second moments
    # are accumulated about this shift, which keeps Cov = E[..] - mm^T well
    # conditioned even for inputs with |mean| >> std.
    prefix = min(hw, 8192)
    shift = jnp.mean(x_nchw.reshape(n, cin, hw)[:, :, :prefix],
                     axis=(0, 2)).astype(jnp.float32)          # (3,)

    # ---------------- pass 1: shifted first/second moments of x --------------
    def stats_kernel(shift_ref, x_ref, acc_ref):
        p = pl.program_id(1)
        t = pl.program_id(2)

        @pl.when(t == 0)
        def _init():
            acc_ref[...] = jnp.zeros_like(acc_ref)

        x0 = x_ref[0] - shift_ref[0]
        x1 = x_ref[1] - shift_ref[1]
        x2 = x_ref[2] - shift_ref[2]

        def accumulate(y0, y1, y2):
            def rsum(v):  # sublane reduce rides the XLU slot
                return jnp.sum(v, axis=0, keepdims=True)       # (1, lane)
            acc_ref[...] += jnp.concatenate(
                [rsum(y0), rsum(y1), rsum(y2),
                 rsum(y0 * y0), rsum(y0 * y1), rsum(y0 * y2),
                 rsum(y1 * y1), rsum(y1 * y2), rsum(y2 * y2)],
                axis=0)                                        # (9, lane)

        if need_mask:
            gt = p * t_inner + t
            last = grid_t - 1

            @pl.when(gt != last)        # full tiles: no masking cost
            def _full():
                accumulate(x0, x1, x2)

            @pl.when(gt == last)        # only the ragged last tile pays a mask
            def _ragged():
                rows = jax.lax.broadcasted_iota(jnp.int32, (sub, lane), 0)
                cols = jax.lax.broadcasted_iota(jnp.int32, (sub, lane), 1)
                pix = (gt * sub + rows) * lane + cols
                valid = pix < hw
                accumulate(jnp.where(valid, x0, 0.0),
                           jnp.where(valid, x1, 0.0),
                           jnp.where(valid, x2, 0.0))
        else:
            accumulate(x0, x1, x2)

    partials = pl.pallas_call(
        stats_kernel,
        out_shape=jax.ShapeDtypeStruct((n, p_split, 9, lane), jnp.float32),
        grid=(n, p_split, t_inner),
        in_specs=[
            pl.BlockSpec(memory_space=pltpu.MemorySpace.SMEM),   # shift (3,)
            pl.BlockSpec((None, 3, sub, lane),
                         lambda i, p, t: (i, 0, p * t_inner + t, 0)),
        ],
        # tiny resident accumulator across the (arbitrary) pixel-tile axis
        out_specs=pl.BlockSpec((None, None, 9, lane),
                               lambda i, p, t: (i, p, 0, 0)),
        compiler_params=pltpu.CompilerParams(
            dimension_semantics=("parallel", "parallel", "arbitrary"),
            vmem_limit_bytes=budget),
    )(shift, x4)

    stats9 = jnp.sum(partials, axis=(0, 1, 3))           # (9,) tiny XLA reduce
    count = float(n * hw)                                # true pixel count
    coef = _fold_affine(shift, stats9, count, params)    # (4,) = [a0,a1,a2,b0]

    # ---------------- pass 2: y = sigmoid(a . x + b0), lane-dense tiles ------
    def apply_kernel(coef_ref, x_ref, o_ref):
        a0 = coef_ref[0]
        a1 = coef_ref[1]
        a2 = coef_ref[2]
        b0 = coef_ref[3]
        z = a0 * x_ref[0] + a1 * x_ref[1] + a2 * x_ref[2] + b0
        # sigmoid(z) = 0.5*tanh(z/2)+0.5 : transcendental stays on the EUP,
        # no VALU divide and no approx-reciprocal precision loss.
        o_ref[...] = 0.5 * jnp.tanh(0.5 * z) + 0.5

    out4 = pl.pallas_call(
        apply_kernel,
        out_shape=jax.ShapeDtypeStruct((n, t_rows, lane), jnp.float32),
        grid=(n, grid_t),
        in_specs=[
            pl.BlockSpec(memory_space=pltpu.MemorySpace.SMEM),   # coef (4,)
            pl.BlockSpec((None, 3, sub, lane), lambda i, t: (i, 0, t, 0)),
        ],
        out_specs=pl.BlockSpec((None, sub, lane), lambda i, t: (i, t, 0)),
        compiler_params=pltpu.CompilerParams(
            dimension_semantics=("parallel", "parallel"),
            vmem_limit_bytes=budget),
    )(coef, x4)

    out_flat = out4.reshape(n, hwp)
    if hwp != hw:
        out_flat = out_flat[:, :hw]
    return out_flat.reshape(n, 1, h, w)


# ----------------------------------------------------------------------------
# Pure-JAX layered reference (mirrors the PyTorch module, for correctness)
# ----------------------------------------------------------------------------
def _bn(hh, gamma, beta):
    mean = jnp.mean(hh, axis=1, keepdims=True)
    var = jnp.mean(jnp.square(hh - mean), axis=1, keepdims=True)
    return gamma * (hh - mean) * jax.lax.rsqrt(var + EPS) + beta


def reference_forward(x_nchw, params):
    w1, wr, b, g, be, wo = params
    n, cin, h, w = x_nchw.shape
    x = jnp.transpose(x_nchw, (1, 0, 2, 3)).reshape(cin, -1)
    hh = w1 @ x + b[0]
    hh = _bn(hh, g[0], be[0])
    for l in range(4):
        hh = wr[l] @ hh + b[l + 1]
        hh = _bn(hh, g[l + 1], be[l + 1])
    out = jax.nn.sigmoid(wo @ hh)
    return jnp.transpose(out.reshape(1, n, h, w), (1, 0, 2, 3))


def init_params(key, c, cin):
    """Deterministic synthetic parameters (module __init__ gives the shapes)."""
    k0, k1, k2, k3 = jax.random.split(key, 4)
    w1 = jax.random.normal(k0, (c, cin), jnp.float32) * (1.0 / jnp.sqrt(cin))
    wr = jax.random.normal(k1, (4, c, c), jnp.float32) * (1.0 / jnp.sqrt(c))
    b = jax.random.normal(k2, (5, c, 1), jnp.float32) * 0.1
    g = jnp.ones((5, c, 1), jnp.float32)     # BatchNorm2d default weight
    be = jnp.zeros((5, c, 1), jnp.float32)   # BatchNorm2d default bias
    wo = jax.random.normal(k3, (1, c), jnp.float32) * (1.0 / jnp.sqrt(c))
    return w1, wr, b, g, be, wo


if __name__ == "__main__":
    conf = {'channels': 8, 'components': [0, 0, 0, 0], 'size': 5, 'alpha': 0.65}
    C = conf['channels']

    key = jax.random.PRNGKey(0)
    kx, kp, kx2 = jax.random.split(key, 3)
    params = init_params(kp, C, 3)

    fwd = jax.jit(lambda xx, pp: cdepde_forward(xx, pp, conf))

    # Primary check: (2, 3, 16, 16), hw divisible by 128 (lane-dense fast path).
    # Non-zero mean input also exercises the shifted-moment stability.
    x = jax.random.normal(kx, (2, 3, 16, 16), jnp.float32) * 2.0 + 1.5
    out = jax.block_until_ready(fwd(x, params))
    ref = jax.block_until_ready(reference_forward(x, params))
    assert out.shape == (2, 1, 16, 16), out.shape
    assert bool(jnp.all(jnp.isfinite(out)))
    err = float(jnp.max(jnp.abs(out - ref)))
    assert err < 1e-4, err

    # Secondary check: (2, 3, 20, 20) -> hw % 128 != 0 exercises the pad
    # fallback and the gated ragged-tile mask branch.
    x2 = jax.random.normal(kx2, (2, 3, 20, 20), jnp.float32)
    out2 = jax.block_until_ready(fwd(x2, params))
    ref2 = jax.block_until_ready(reference_forward(x2, params))
    assert out2.shape == (2, 1, 20, 20), out2.shape
    assert bool(jnp.all(jnp.isfinite(out2)))
    err2 = float(jnp.max(jnp.abs(out2 - ref2)))
    assert err2 < 1e-4, err2

    print("KERNEL_OK")
</pallas_src>

<mosaic_0001>
module attributes {stable_mosaic.version = 11 : i64} {
  func.func @stats_kernel(%arg0: i32, %arg1: i32, %arg2: i32, %arg3: memref<3xf32, #tpu.memory_space<smem>>, %arg4: memref<1x3x1x256xf32, #tpu.memory_space<vmem>>, %arg5: memref<1x1x9x256xf32, #tpu.memory_space<vmem>>) attributes {dimension_semantics = [#tpu.dimension_semantics<parallel>, #tpu.dimension_semantics<parallel>, #tpu.dimension_semantics<arbitrary>], iteration_bounds = array<i64: 2, 1, 1>, scalar_prefetch = 0 : i64, scratch_operands = 0 : i64, tpu.core_type = #tpu.core_type<tc>, window_params = [{transform_indices = @transform_0, window_bounds = array<i64: 3>}, {transform_indices = @transform_1, window_bounds = array<i64: 1, 3, 1, 256>}, {transform_indices = @transform_2, window_bounds = array<i64: 1, 1, 9, 256>}]} {
    %c0_i32 = arith.constant 0 : i32
    %0 = arith.cmpi eq, %arg2, %c0_i32 : i32
    %1 = arith.extui %0 : i1 to i32
    %c0_i32_0 = arith.constant 0 : i32
    %2 = arith.cmpi ne, %1, %c0_i32_0 : i32
    scf.if %2 {
      %cst_29 = arith.constant 0.000000e+00 : f32
      %49 = vector.broadcast %cst_29 : f32 to vector<9x256xf32>
      %c0_30 = arith.constant 0 : index
      %c0_31 = arith.constant 0 : index
      %c0_32 = arith.constant 0 : index
      %c0_33 = arith.constant 0 : index
      %50 = vector.load %arg5[%c0_30, %c0_31, %c0_32, %c0_33] : memref<1x1x9x256xf32, #tpu.memory_space<vmem>>, vector<1x1x9x256xf32>
      %51 = vector.shape_cast %50 : vector<1x1x9x256xf32> to vector<9x256xf32>
      %52 = vector.shape_cast %49 : vector<9x256xf32> to vector<1x1x9x256xf32>
      tpu.vector_store %arg5[%c0_30, %c0_31, %c0_32, %c0_33], %52 {strides = array<i32>} : memref<1x1x9x256xf32, #tpu.memory_space<vmem>>, vector<1x1x9x256xf32>,
    } else {
    }
    %c0 = arith.constant 0 : index
    %c0_1 = arith.constant 0 : index
    %c0_2 = arith.constant 0 : index
    %c0_3 = arith.constant 0 : index
    %3 = vector.load %arg4[%c0, %c0_1, %c0_2, %c0_3] : memref<1x3x1x256xf32, #tpu.memory_space<vmem>>, vector<1x1x1x256xf32>
    %4 = vector.shape_cast %3 : vector<1x1x1x256xf32> to vector<1x256xf32>
    %c0_4 = arith.constant 0 : index
    %5 = memref.load %arg3[%c0_4] : memref<3xf32, #tpu.memory_space<smem>>
    %6 = vector.broadcast %5 : f32 to vector<1x256xf32>
    %7 = arith.subf %4, %6 : vector<1x256xf32>
    %c0_5 = arith.constant 0 : index
    %c1 = arith.constant 1 : index
    %c0_6 = arith.constant 0 : index
    %c0_7 = arith.constant 0 : index
    %8 = vector.load %arg4[%c0_5, %c1, %c0_6, %c0_7] : memref<1x3x1x256xf32, #tpu.memory_space<vmem>>, vector<1x1x1x256xf32>
    %9 = vector.shape_cast %8 : vector<1x1x1x256xf32> to vector<1x256xf32>
    %c1_8 = arith.constant 1 : index
    %10 = memref.load %arg3[%c1_8] : memref<3xf32, #tpu.memory_space<smem>>
    %11 = vector.broadcast %10 : f32 to vector<1x256xf32>
    %12 = arith.subf %9, %11 : vector<1x256xf32>
    %c0_9 = arith.constant 0 : index
    %c2 = arith.constant 2 : index
    %c0_10 = arith.constant 0 : index
    %c0_11 = arith.constant 0 : index
    %13 = vector.load %arg4[%c0_9, %c2, %c0_10, %c0_11] : memref<1x3x1x256xf32, #tpu.memory_space<vmem>>, vector<1x1x1x256xf32>
    %14 = vector.shape_cast %13 : vector<1x1x1x256xf32> to vector<1x256xf32>
    %c2_12 = arith.constant 2 : index
    %15 = memref.load %arg3[%c2_12] : memref<3xf32, #tpu.memory_space<smem>>
    %16 = vector.broadcast %15 : f32 to vector<1x256xf32>
    %17 = arith.subf %14, %16 : vector<1x256xf32>
    %c0_13 = arith.constant 0 : index
    %c0_14 = arith.constant 0 : index
    %c0_15 = arith.constant 0 : index
    %c0_16 = arith.constant 0 : index
    %18 = vector.load %arg5[%c0_13, %c0_14, %c0_15, %c0_16] : memref<1x1x9x256xf32, #tpu.memory_space<vmem>>, vector<1x1x9x256xf32>
    %19 = vector.shape_cast %18 : vector<1x1x9x256xf32> to vector<9x256xf32>
    %cst = arith.constant dense<0.000000e+00> : vector<256xf32>
    %20 = vector.multi_reduction <add>, %7, %cst [0] : vector<1x256xf32> to vector<256xf32>
    %21 = vector.shape_cast %20 : vector<256xf32> to vector<1x256xf32>
    %cst_17 = arith.constant dense<0.000000e+00> : vector<256xf32>
    %22 = vector.multi_reduction <add>, %12, %cst_17 [0] : vector<1x256xf32> to vector<256xf32>
    %23 = vector.shape_cast %22 : vector<256xf32> to vector<1x256xf32>
    %cst_18 = arith.constant dense<0.000000e+00> : vector<256xf32>
    %24 = vector.multi_reduction <add>, %17, %cst_18 [0] : vector<1x256xf32> to vector<256xf32>
    %25 = vector.shape_cast %24 : vector<256xf32> to vector<1x256xf32>
    %26 = arith.mulf %7, %7 : vector<1x256xf32>
    %cst_19 = arith.constant dense<0.000000e+00> : vector<256xf32>
    %27 = vector.multi_reduction <add>, %26, %cst_19 [0] : vector<1x256xf32> to vector<256xf32>
    %28 = vector.shape_cast %27 : vector<256xf32> to vector<1x256xf32>
    %29 = arith.mulf %7, %12 : vector<1x256xf32>
    %cst_20 = arith.constant dense<0.000000e+00> : vector<256xf32>
    %30 = vector.multi_reduction <add>, %29, %cst_20 [0] : vector<1x256xf32> to vector<256xf32>
    %31 = vector.shape_cast %30 : vector<256xf32> to vector<1x256xf32>
    %32 = arith.mulf %7, %17 : vector<1x256xf32>
    %cst_21 = arith.constant dense<0.000000e+00> : vector<256xf32>
    %33 = vector.multi_reduction <add>, %32, %cst_21 [0] : vector<1x256xf32> to vector<256xf32>
    %34 = vector.shape_cast %33 : vector<256xf32> to vector<1x256xf32>
    %35 = arith.mulf %12, %12 : vector<1x256xf32>
    %cst_22 = arith.constant dense<0.000000e+00> : vector<256xf32>
    %36 = vector.multi_reduction <add>, %35, %cst_22 [0] : vector<1x256xf32> to vector<256xf32>
    %37 = vector.shape_cast %36 : vector<256xf32> to vector<1x256xf32>
    %38 = arith.mulf %12, %17 : vector<1x256xf32>
    %cst_23 = arith.constant dense<0.000000e+00> : vector<256xf32>
    %39 = vector.multi_reduction <add>, %38, %cst_23 [0] : vector<1x256xf32> to vector<256xf32>
    %40 = vector.shape_cast %39 : vector<256xf32> to vector<1x256xf32>
    %41 = arith.mulf %17, %17 : vector<1x256xf32>
    %cst_24 = arith.constant dense<0.000000e+00> : vector<256xf32>
    %42 = vector.multi_reduction <add>, %41, %cst_24 [0] : vector<1x256xf32> to vector<256xf32>
    %43 = vector.shape_cast %42 : vector<256xf32> to vector<1x256xf32>
    %44 = tpu.concatenate %21, %23, %25, %28, %31, %34, %37, %40, %43 in 0 : vector<1x256xf32>, vector<1x256xf32>, vector<1x256xf32>, vector<1x256xf32>, vector<1x256xf32>, vector<1x256xf32>, vector<1x256xf32>, vector<1x256xf32>, vector<1x256xf32> -> vector<9x256xf32>
    %45 = arith.addf %19, %44 : vector<9x256xf32>
    %c0_25 = arith.constant 0 : index
    %c0_26 = arith.constant 0 : index
    %c0_27 = arith.constant 0 : index
    %c0_28 = arith.constant 0 : index
    %46 = vector.load %arg5[%c0_25, %c0_26, %c0_27, %c0_28] : memref<1x1x9x256xf32, #tpu.memory_space<vmem>>, vector<1x1x9x256xf32>
    %47 = vector.shape_cast %46 : vector<1x1x9x256xf32> to vector<9x256xf32>
    %48 = vector.shape_cast %45 : vector<9x256xf32> to vector<1x1x9x256xf32>
    tpu.vector_store %arg5[%c0_25, %c0_26, %c0_27, %c0_28], %48 {strides = array<i32>} : memref<1x1x9x256xf32, #tpu.memory_space<vmem>>, vector<1x1x9x256xf32>,
    return
  }
  func.func @transform_0(%arg0: i32, %arg1: i32, %arg2: i32) -> i32 {
    %c0_i32 = arith.constant 0 : i32
    %c0_i32_0 = arith.constant 0 : i32
    return %c0_i32 : i32
  }
  func.func @transform_1(%arg0: i32, %arg1: i32, %arg2: i32) -> (i32, i32, i32, i32) {
    %c1_i32 = arith.constant 1 : i32
    %0 = arith.muli %arg1, %c1_i32 : i32
    %1 = arith.addi %0, %arg2 : i32
    %c0_i32 = arith.constant 0 : i32
    %c0_i32_0 = arith.constant 0 : i32
    %c0_i32_1 = arith.constant 0 : i32
    return %arg0, %c0_i32, %1, %c0_i32_0 : i32, i32, i32, i32
  }
  func.func @transform_2(%arg0: i32, %arg1: i32, %arg2: i32) -> (i32, i32, i32, i32) {
    %c0_i32 = arith.constant 0 : i32
    %c0_i32_0 = arith.constant 0 : i32
    %c0_i32_1 = arith.constant 0 : i32
    return %arg0, %arg1, %c0_i32, %c0_i32_0 : i32, i32, i32, i32
  }
}

module attributes {stable_mosaic.version = 11 : i64} {
  func.func @apply_kernel(%arg0: i32, %arg1: i32, %arg2: memref<4xf32, #tpu.memory_space<smem>>, %arg3: memref<1x3x1x256xf32, #tpu.memory_space<vmem>>, %arg4: memref<1x1x256xf32, #tpu.memory_space<vmem>>) attributes {dimension_semantics = [#tpu.dimension_semantics<parallel>, #tpu.dimension_semantics<parallel>], iteration_bounds = array<i64: 2, 1>, scalar_prefetch = 0 : i64, scratch_operands = 0 : i64, tpu.core_type = #tpu.core_type<tc>, window_params = [{transform_indices = @transform_0, window_bounds = array<i64: 4>}, {transform_indices = @transform_1, window_bounds = array<i64: 1, 3, 1, 256>}, {transform_indices = @transform_2, window_bounds = array<i64: 1, 1, 256>}]} {
    %c0 = arith.constant 0 : index
    %0 = memref.load %arg2[%c0] : memref<4xf32, #tpu.memory_space<smem>>
    %c1 = arith.constant 1 : index
    %1 = memref.load %arg2[%c1] : memref<4xf32, #tpu.memory_space<smem>>
    %c2 = arith.constant 2 : index
    %2 = memref.load %arg2[%c2] : memref<4xf32, #tpu.memory_space<smem>>
    %c3 = arith.constant 3 : index
    %3 = memref.load %arg2[%c3] : memref<4xf32, #tpu.memory_space<smem>>
    %c0_0 = arith.constant 0 : index
    %c0_1 = arith.constant 0 : index
    %c0_2 = arith.constant 0 : index
    %c0_3 = arith.constant 0 : index
    %4 = vector.load %arg3[%c0_0, %c0_1, %c0_2, %c0_3] : memref<1x3x1x256xf32, #tpu.memory_space<vmem>>, vector<1x1x1x256xf32>
    %5 = vector.shape_cast %4 : vector<1x1x1x256xf32> to vector<1x256xf32>
    %6 = vector.broadcast %0 : f32 to vector<1x256xf32>
    %7 = arith.mulf %6, %5 : vector<1x256xf32>
    %c0_4 = arith.constant 0 : index
    %c1_5 = arith.constant 1 : index
    %c0_6 = arith.constant 0 : index
    %c0_7 = arith.constant 0 : index
    %8 = vector.load %arg3[%c0_4, %c1_5, %c0_6, %c0_7] : memref<1x3x1x256xf32, #tpu.memory_space<vmem>>, vector<1x1x1x256xf32>
    %9 = vector.shape_cast %8 : vector<1x1x1x256xf32> to vector<1x256xf32>
    %10 = vector.broadcast %1 : f32 to vector<1x256xf32>
    %11 = arith.mulf %10, %9 : vector<1x256xf32>
    %12 = arith.addf %7, %11 : vector<1x256xf32>
    %c0_8 = arith.constant 0 : index
    %c2_9 = arith.constant 2 : index
    %c0_10 = arith.constant 0 : index
    %c0_11 = arith.constant 0 : index
    %13 = vector.load %arg3[%c0_8, %c2_9, %c0_10, %c0_11] : memref<1x3x1x256xf32, #tpu.memory_space<vmem>>, vector<1x1x1x256xf32>
    %14 = vector.shape_cast %13 : vector<1x1x1x256xf32> to vector<1x256xf32>
    %15 = vector.broadcast %2 : f32 to vector<1x256xf32>
    %16 = arith.mulf %15, %14 : vector<1x256xf32>
    %17 = arith.addf %12, %16 : vector<1x256xf32>
    %18 = vector.broadcast %3 : f32 to vector<1x256xf32>
    %19 = arith.addf %17, %18 : vector<1x256xf32>
    %cst = arith.constant 5.000000e-01 : f32
    %20 = vector.broadcast %cst : f32 to vector<1x256xf32>
    %21 = arith.mulf %20, %19 : vector<1x256xf32>
    %22 = math.tanh %21 : vector<1x256xf32>
    %cst_12 = arith.constant 5.000000e-01 : f32
    %23 = vector.broadcast %cst_12 : f32 to vector<1x256xf32>
    %24 = arith.mulf %23, %22 : vector<1x256xf32>
    %cst_13 = arith.constant 5.000000e-01 : f32
    %25 = vector.broadcast %cst_13 : f32 to vector<1x256xf32>
    %26 = arith.addf %24, %25 : vector<1x256xf32>
    %c0_14 = arith.constant 0 : index
    %c0_15 = arith.constant 0 : index
    %c0_16 = arith.constant 0 : index
    %27 = vector.load %arg4[%c0_14, %c0_15, %c0_16] : memref<1x1x256xf32, #tpu.memory_space<vmem>>, vector<1x1x256xf32>
    %28 = vector.shape_cast %27 : vector<1x1x256xf32> to vector<1x256xf32>
    %29 = vector.shape_cast %26 : vector<1x256xf32> to vector<1x1x256xf32>
    tpu.vector_store %arg4[%c0_14, %c0_15, %c0_16], %29 {strides = array<i32>} : memref<1x1x256xf32, #tpu.memory_space<vmem>>, vector<1x1x256xf32>,
    return
  }
  func.func @transform_0(%arg0: i32, %arg1: i32) -> i32 {
    %c0_i32 = arith.constant 0 : i32
    %c0_i32_0 = arith.constant 0 : i32
    return %c0_i32 : i32
  }
  func.func @transform_1(%arg0: i32, %arg1: i32) -> (i32, i32, i32, i32) {
    %c0_i32 = arith.constant 0 : i32
    %c0_i32_0 = arith.constant 0 : i32
    %c0_i32_1 = arith.constant 0 : i32
    return %arg0, %c0_i32, %arg1, %c0_i32_0 : i32, i32, i32, i32
  }
  func.func @transform_2(%arg0: i32, %arg1: i32) -> (i32, i32, i32) {
    %c0_i32 = arith.constant 0 : i32
    %c0_i32_0 = arith.constant 0 : i32
    return %arg0, %arg1, %c0_i32 : i32, i32, i32
  }
}

</mosaic_0001>

<llo_original>
// kernel: _lambda_.2
$region0: #{_lambda_.2}
  #allocation0 [shape = 'u32[]', space=smem, size = 0x4, offset = 0x4, fixed_abs, tag = 'smem constant byte address 0x4 - core index']
  #allocation1 [shape = 'u32[144,128]{1,0:T(1,128)}', space=vmem, size = 0x12000, scoped, tag = 'internal scratch']
  %s0 = inlined_call_operand.vmem [shape: f32[3], index: 0, kind: input, shape index: {}]
  %s1 = inlined_call_operand.vmem [shape: f32[2,3,1,256], index: 1, kind: input, shape index: {}]
  %s2 = inlined_call_operand.vmem [shape: f32[2,1,9,256], index: 2, kind: output, shape index: {}]
  %s3 = sld [smem:[#allocation0]]
  $region49: #{_lambda_.2} parent=0
    _
  %s5 = ssub.s32 1, %s3
  %s6 = scalar_select 0, %s5, %s3
  $region1: #{_lambda_.2} parent=0
    #allocation2 [shape = 'u8[512]{0}', space=smem, size = 0x200, scoped, tag = 'input window, operand 0, single buffered']
    #allocation3 [shape = 's32[2]{0}', space=sflag, size = 0x8, scoped, tag = 'scoped memory for _lambda_.2']
    %7 = vsyncpa [#allocation3], 0
    loop: start=0, step=1, limit=4
    $region2: #{_lambda_.2} parent=1 // loop_pre_header
      _
    $region3: #{_lambda_.2} parent=1 // loop_header
      %s9 = sphi 0, %s13
      %p10 = scmp.ge.s32.totalorder %s9, 4
      %s16 = sphi 0, %s35
      %s17 = sphi 0, %s31
      %s18 = sphi 0, %s27
      %s19 = sphi 0, %s16
      %s20 = sphi 0, %s17
      %s21 = sphi 0, %s18
      %s22 = sphi 0, %s19
      %s23 = sphi 0, %s20
      %s24 = sphi 0, %s21
      %s36 = sphi 0, %s36
      %s38 = sphi 0, %s36
      %s39 = sphi 0, %s38
      %s53 = sphi 0, %s39
      %s63 = sphi 0, %s65
      %s66 = sphi 0, %s63
      %s67 = sphi 0, %s66
      %s83 = sphi 0, %s67
      %s91 = sphi 0, %s93
      %s94 = sphi 0, %s91
      %s95 = sphi 0, %s94
      %s111 = sphi 0, %s95
    $region4: #{_lambda_.2} parent=1 // loop_header_branch
      %12 = sbr.rel (%p10) target = $region8
    $region5: #{_lambda_.2} parent=1 // loop_body
      %s14 = ssub.s32 %s9, 1
      %s15 = ssub.s32 %s9, 2
      %s25 = sadd.s32 1, %s18
      %p26 = scmp.ge.s32.totalorder %s25, 1
      %s27 = scalar_select %p26, 0, %s25
      %s28 = sadd.s32 1, %s17
      %s29 = scalar_select %p26, %s28, %s17
      %p30 = scmp.ge.s32.totalorder %s29, 1
      %s31 = scalar_select %p30, 0, %s29
      %s32 = sadd.s32 1, %s16
      %s33 = scalar_select %p30, %s32, %s16
      %p34 = scmp.ge.s32.totalorder %s33, 2
      %s35 = scalar_select %p34, 0, %s33
      %s37 = sadd.s32 %s36, 1
      %p40 = scmp.eq.s32.totalorder %s9, 1
      %p41 = scmp.ne.s32.totalorder %s36, %s38
      %p42 = scmp.eq.s32.totalorder %s9, 0
      %p43 = por %p41, %p42
      %p44 = scmp.ne.s32.totalorder %s36, %s38
      %p45 = scmp.eq.s32.totalorder %s14, 1
      %p46 = por %p44, %p45
      %p47 = scmp.ne.s32.totalorder %s38, %s39
      %p48 = scmp.eq.s32.totalorder %s14, 0
      %p49 = por %p47, %p48
      %p50 = scmp.ne.s32.totalorder %s38, %s39
      %p51 = scmp.eq.s32.totalorder %s15, 1
      %p52 = por %p50, %p51
      %p54 = scmp.ne.s32.totalorder %s39, %s53
      %p55 = scmp.eq.s32.totalorder %s15, 0
      %p56 = por %p54, %p55
      %s57 = sadd.s32 %s17, %s18
      %s58 = sadd.s32 %s31, %s27
      %s59 = ssub.s32 %s16, %s35
      %s60 = ssub.s32 %s57, %s58
      %s61 = sor.u32 %s59, %s60
      %p62 = scmp.eq.s32.totalorder %s61, 0
      %s64 = sadd.s32 %s63, 1
      %s65 = scalar_select %p62, %s63, %s64
      %p68 = pneg %p62
      %p69 = scmp.eq.s32.totalorder %s9, 1
      %p70 = por %p68, %p69
      %p71 = scmp.ne.s32.totalorder %s63, %s66
      %p72 = scmp.eq.s32.totalorder %s9, 0
      %p73 = por %p71, %p72
      %p74 = scmp.ne.s32.totalorder %s63, %s66
      %p75 = scmp.eq.s32.totalorder %s14, 1
      %p76 = por %p74, %p75
      %p77 = scmp.ne.s32.totalorder %s66, %s67
      %p78 = scmp.eq.s32.totalorder %s14, 0
      %p79 = por %p77, %p78
      %p80 = scmp.ne.s32.totalorder %s66, %s67
      %p81 = scmp.eq.s32.totalorder %s15, 1
      %p82 = por %p80, %p81
      %p84 = scmp.ne.s32.totalorder %s67, %s83
      %p85 = scmp.eq.s32.totalorder %s15, 0
      %p86 = por %p84, %p85
      %s87 = ssub.s32 %s16, %s35
      %s88 = ssub.s32 %s17, %s31
      %s89 = sor.u32 %s87, %s88
      %p90 = scmp.eq.s32.totalorder %s89, 0
      %s92 = sadd.s32 %s91, 1
      %s93 = scalar_select %p90, %s91, %s92
      %p96 = pneg %p90
      %p97 = scmp.eq.s32.totalorder %s9, 1
      %p98 = por %p96, %p97
      %p99 = scmp.ne.s32.totalorder %s91, %s94
      %p100 = scmp.eq.s32.totalorder %s9, 0
      %p101 = por %p99, %p100
      %p102 = scmp.ne.s32.totalorder %s91, %s94
      %p103 = scmp.eq.s32.totalorder %s14, 1
      %p104 = por %p102, %p103
      %p105 = scmp.ne.s32.totalorder %s94, %s95
      %p106 = scmp.eq.s32.totalorder %s14, 0
      %p107 = por %p105, %p106
      %p108 = scmp.ne.s32.totalorder %s94, %s95
      %p109 = scmp.eq.s32.totalorder %s15, 1
      %p110 = por %p108, %p109
      %p112 = scmp.ne.s32.totalorder %s95, %s111
      %p113 = scmp.eq.s32.totalorder %s15, 0
      %p114 = por %p112, %p113
      %p115 = scmp.le.s32.totalorder 1, %s9
      %p116 = scmp.lt.s32.totalorder %s9, 3
      %p117 = pnand %p115, %p116
      %p118 = pneg %p117
      // Predicated region
      $region9: #{_lambda_.2} parent=5 // pred_check
        _
      $region10: #{_lambda_.2} parent=5 // pred_check_branch
        %120 = sbr.rel (%p117) target = $region12
      $region11: #{_lambda_.2} parent=5 // pred_region
        %s121 = ssub.s32 %s9, 1
        // Predicated region
        $region13: #{_lambda_.2} parent=11 // pred_check
          %p122 = pneg %p49
        $region14: #{_lambda_.2} parent=11 // pred_check_branch
          %124 = sbr.rel (%p122) target = $region16
        $region15: #{_lambda_.2} parent=11 // pred_region
          %s126 = ssub.s32 16, 16
          %127 = vsyncadd [#allocation3], %s126
          %s129 = sshll.u32 %s0, 4
          %s130 = int_to_ptr.vmem [resolvable:$true] %s129
          %132 = dma.vmem_to_smem %s130, 16, [#allocation2], [#allocation3]
        $region16: #{_lambda_.2} parent=11 // pred_fallthru
          _
      $region12: #{_lambda_.2} parent=5 // pred_fallthru
        _
      %p133 = scmp.lt.s32.totalorder %s9, 2
      // Predicated region
      $region17: #{_lambda_.2} parent=5 // pred_check
        %p134 = pneg %p133
      $region18: #{_lambda_.2} parent=5 // pred_check_branch
        %136 = sbr.rel (%p134) target = $region20
      $region19: #{_lambda_.2} parent=5 // pred_region
        // Predicated region
        $region21: #{_lambda_.2} parent=19 // pred_check
          %p137 = pneg %p73
        $region22: #{_lambda_.2} parent=19 // pred_check_branch
          %139 = sbr.rel (%p137) target = $region24
        $region23: #{_lambda_.2} parent=19 // pred_region
          %s140 = sadd.s32 %s17, %s18
          %p141 = scmp.lt.s32.totalorder %s16, 1
          %s142 = scalar_select %p141, %s16, 1
          %p143 = scmp.lt.s32.totalorder %s140, 0
          %s144 = scalar_select %p143, %s140, 0
          %s145 = smul.addr %s144, 2
          %s146 = smul.addr %s142, 6
          %s147 = sadd.s32 %s145, %s146
          %s148 = scalar_lea.vmem %s1, %s147
          %s149 = sadd.s32 %s17, %s18
        $region24: #{_lambda_.2} parent=19 // pred_fallthru
          _
      $region20: #{_lambda_.2} parent=5 // pred_fallthru
        _
      %p150 = scmp.le.s32.totalorder 1, %s9
      %p151 = scmp.lt.s32.totalorder %s9, 3
      %p152 = pnand %p150, %p151
      %p153 = pneg %p152
      // Predicated region
      $region25: #{_lambda_.2} parent=5 // pred_check
        _
      $region26: #{_lambda_.2} parent=5 // pred_check_branch
        %155 = sbr.rel (%p152) target = $region28
      $region27: #{_lambda_.2} parent=5 // pred_region
        %s156 = ssub.s32 %s9, 1
        // Predicated region
        $region29: #{_lambda_.2} parent=27 // pred_check
          %p157 = pneg %p49
        $region30: #{_lambda_.2} parent=27 // pred_check_branch
          %159 = sbr.rel (%p157) target = $region32
        $region31: #{_lambda_.2} parent=27 // pred_region
          %160 = dma.done [#allocation3], 16
        $region32: #{_lambda_.2} parent=27 // pred_fallthru
          _
        %161 = sfence
        %p162 = pneg %p49
        %p163 = pneg %p46
        %s164 = sadd.s32 %s20, %s21
        %p165 = scmp.lt.s32.totalorder %s19, 1
        %s166 = scalar_select %p165, %s19, 1
        %p167 = scmp.lt.s32.totalorder %s164, 0
        %s168 = scalar_select %p167, %s164, 0
        %s169 = smul.addr %s168, 2
        %s170 = smul.addr %s166, 6
        %s171 = sadd.s32 %s169, %s170
        %s172 = scalar_lea.vmem %s1, %s171
        %p173 = pneg %p79
        %p174 = pneg %p76
        %p175 = pneg %p107
        %p176 = pneg %p104
        %p177 = scmp.lt.s32.totalorder %s19, 1
        %s178 = scalar_select %p177, %s19, 1
        %p179 = scmp.lt.s32.totalorder %s20, 0
        %s180 = scalar_select %p179, %s20, 0
        %s181 = smul.addr %s180, 4
        %s182 = smul.addr %s178, 4
        %s183 = sadd.s32 %s181, %s182
        %s184 = smul.addr %s183, 8
        %s185 = scalar_lea.vmem %s2, %s184
        %s186 = sadd.s32 %s20, %s21
        %p187 = scmp.lt.s32.totalorder %s19, 1
        %s188 = scalar_select %p187, %s19, 1
        %p189 = scmp.lt.s32.totalorder %s186, 0
        %s190 = scalar_select %p189, %s186, 0
        %s191 = smul.addr %s190, 2
        %s192 = smul.addr %s188, 6
        %s193 = sadd.s32 %s191, %s192
        %s194 = scalar_lea.vmem %s1, %s193
        %s195 = sadd.s32 %s20, %s21
        %p196 = scmp.lt.s32.totalorder %s19, 1
        %s197 = scalar_select %p196, %s19, 1
        %p198 = scmp.lt.s32.totalorder %s20, 0
        %s199 = scalar_select %p198, %s20, 0
        %s200 = smul.addr %s199, 4
        %s201 = smul.addr %s197, 4
        %s202 = sadd.s32 %s200, %s201
        %s203 = smul.addr %s202, 8
        %s204 = scalar_lea.vmem %s2, %s203
        %p205 = scmp.eq.s32.totalorder %s21, 0
        // Predicated region
        $region33: #{_lambda_.2} parent=27 // pred_check
          %p206 = pneg %p205
        $region34: #{_lambda_.2} parent=27 // pred_check_branch
          %208 = sbr.rel (%p206) target = $region36
        $region35: #{_lambda_.2} parent=27 // pred_region
          %209 = vst [vmem:[%s204] sm:$0xff] 0.0
          %210 = vst [vmem:[%s204 + $0x8] sm:$0xff] 0.0
          %211 = vst [vmem:[%s204 + $0x10] sm:$0x1] 0.0
          %212 = vst [vmem:[%s204 + $0x18] sm:$0x1] 0.0
        $region36: #{_lambda_.2} parent=27 // pred_fallthru
          _
        %v213 = vld [vmem:[%s194] sm:$0x3]
        %s214 = sld [smem:[#allocation2]]
        %v215 = vstv %s214
        %v216 = vsub.f32 %v213, %v215
        %s217 = scalar_lea.vmem %s194, 2
        %v218 = vld [vmem:[%s217] sm:$0x3]
        %s219 = sld [smem:[#allocation2 + $0x1]]
        %v220 = vstv %s219
        %v221 = vsub.f32 %v218, %v220
        %s222 = scalar_lea.vmem %s194, 4
        %v223 = vld [vmem:[%s222] sm:$0x3]
        %s224 = sld [smem:[#allocation2 + $0x2]]
        %v225 = vstv %s224
        %v226 = vsub.f32 %v223, %v225
        %v227 = vld [vmem:[%s204] sm:$0xff]
        %v228 = vld [vmem:[%s204 + $0x8] sm:$0xff]
        %v229 = vld [vmem:[%s204 + $0x10] sm:$0x1]
        %v230 = vld [vmem:[%s204 + $0x18] sm:$0x1]
        %v231 = vadd.f32 %v216, 0.0
        %v232 = vadd.f32 %v221, 0.0
        %v233 = vadd.f32 %v226, 0.0
        %v234 = vmul.f32 %v216, %v216
        %v235 = vadd.f32 %v234, 0.0
        %v236 = vmul.f32 %v216, %v221
        %v237 = vadd.f32 %v236, 0.0
        %v238 = vmul.f32 %v216, %v226
        %v239 = vadd.f32 %v238, 0.0
        %v240 = vmul.f32 %v221, %v221
        %v241 = vadd.f32 %v240, 0.0
        %v242 = vmul.f32 %v221, %v226
        %v243 = vadd.f32 %v242, 0.0
        %v244 = vmul.f32 %v226, %v226
        %v245 = vadd.f32 %v244, 0.0
        %v247 = vlaneseq
        %v248 = vshrl.u32 %v247, 7
        %v249 = vsub.s32 0, %v248
        %v250 = vrot.slane %v231, %v249
        %v251 = vlaneseq
        %v252 = vshrl.u32 %v251, 7
        %v253 = vsub.s32 1, %v252
        %v254 = vrot.slane %v231, %v253
        %v258 = vlaneseq
        %v259 = vshrl.u32 %v258, 7
        %v260 = vsub.s32 0, %v259
        %v261 = vrot.slane %v232, %v260
        %v262 = vlaneseq
        %v263 = vshrl.u32 %v262, 7
        %v264 = vsub.s32 1, %v263
        %v265 = vrot.slane %v232, %v264
        %v269 = vlaneseq
        %v270 = vshrl.u32 %v269, 7
        %v271 = vsub.s32 0, %v270
        %v272 = vrot.slane %v233, %v271
        %v273 = vlaneseq
        %v274 = vshrl.u32 %v273, 7
        %v275 = vsub.s32 1, %v274
        %v276 = vrot.slane %v233, %v275
        %v280 = vlaneseq
        %v281 = vshrl.u32 %v280, 7
        %v282 = vsub.s32 0, %v281
        %v283 = vrot.slane %v235, %v282
        %v284 = vlaneseq
        %v285 = vshrl.u32 %v284, 7
        %v286 = vsub.s32 1, %v285
        %v287 = vrot.slane %v235, %v286
        %v291 = vlaneseq
        %v292 = vshrl.u32 %v291, 7
        %v293 = vsub.s32 0, %v292
        %v294 = vrot.slane %v237, %v293
        %v295 = vlaneseq
        %v296 = vshrl.u32 %v295, 7
        %v297 = vsub.s32 1, %v296
        %v298 = vrot.slane %v237, %v297
        %v302 = vlaneseq
        %v303 = vshrl.u32 %v302, 7
        %v304 = vsub.s32 0, %v303
        %v305 = vrot.slane %v239, %v304
        %v306 = vlaneseq
        %v307 = vshrl.u32 %v306, 7
        %v308 = vsub.s32 1, %v307
        %v309 = vrot.slane %v239, %v308
        %v313 = vlaneseq
        %v314 = vshrl.u32 %v313, 7
        %v315 = vsub.s32 0, %v314
        %v316 = vrot.slane %v241, %v315
        %v317 = vlaneseq
        %v318 = vshrl.u32 %v317, 7
        %v319 = vsub.s32 1, %v318
        %v320 = vrot.slane %v241, %v319
        %v324 = vlaneseq
        %v325 = vshrl.u32 %v324, 7
        %v326 = vsub.s32 0, %v325
        %v327 = vrot.slane %v243, %v326
        %v328 = vlaneseq
        %v329 = vshrl.u32 %v328, 7
        %v330 = vsub.s32 1, %v329
        %v331 = vrot.slane %v243, %v330
        %v335 = vlaneseq
        %v336 = vshrl.u32 %v335, 7
        %v337 = vsub.s32 0, %v336
        %v338 = vrot.slane %v245, %v337
        %v339 = vlaneseq
        %v340 = vshrl.u32 %v339, 7
        %v341 = vsub.s32 1, %v340
        %v342 = vrot.slane %v245, %v341
        %vm345 = vcmask 1040384
        %v346 = vsel %vm345, %v250, %v261
        %v347 = vsel %vm345, %v254, %v265
        %vm348 = vcmask 1041408
        %v349 = vsel %vm348, %v346, %v272
        %v350 = vsel %vm348, %v347, %v276
        %vm351 = vcmask 1042432
        %v352 = vsel %vm351, %v349, %v283
        %v353 = vsel %vm351, %v350, %v287
        %vm354 = vcmask 1043456
        %v355 = vsel %vm354, %v352, %v294
        %v356 = vsel %vm354, %v353, %v298
        %vm357 = vcmask 1044480
        %v358 = vsel %vm357, %v355, %v305
        %v359 = vsel %vm357, %v356, %v309
        %vm360 = vcmask 1045504
        %v361 = vsel %vm360, %v358, %v316
        %v362 = vsel %vm360, %v359, %v320
        %vm363 = vcmask 1046528
        %v364 = vsel %vm363, %v361, %v327
        %v365 = vsel %vm363, %v362, %v331
        %v366 = vadd.f32 %v227, %v364
        %v367 = vadd.f32 %v228, %v365
        %v368 = vadd.f32 %v229, %v338
        %v369 = vadd.f32 %v230, %v342
        %370 = vst [vmem:[%s204] sm:$0xff] %v366
        %371 = vst [vmem:[%s204 + $0x8] sm:$0xff] %v367
        %372 = vst [vmem:[%s204 + $0x10] sm:$0x1] %v368
        %373 = vst [vmem:[%s204 + $0x18] sm:$0x1] %v369
        %p374 = scmp.lt.s32.totalorder %s19, 1
        %s375 = scalar_select %p374, %s19, 1
        %p376 = scmp.lt.s32.totalorder %s20, 0
        %s377 = scalar_select %p376, %s20, 0
        %s378 = smul.addr %s377, 4
        %s379 = smul.addr %s375, 4
        %s380 = sadd.s32 %s378, %s379
        %s381 = smul.addr %s380, 8
        %s382 = scalar_lea.vmem %s2, %s381
        // Predicated region
        $region37: #{_lambda_.2} parent=27 // pred_check
          %p383 = pneg %p104
        $region38: #{_lambda_.2} parent=27 // pred_check_branch
          %385 = sbr.rel (%p383) target = $region40
        $region39: #{_lambda_.2} parent=27 // pred_region
          _
        $region40: #{_lambda_.2} parent=27 // pred_fallthru
          _
      $region28: #{_lambda_.2} parent=5 // pred_fallthru
        _
      %p386 = scmp.le.s32.totalorder 2, %s9
      // Predicated region
      $region41: #{_lambda_.2} parent=5 // pred_check
        %p387 = pneg %p386
      $region42: #{_lambda_.2} parent=5 // pred_check_branch
        %389 = sbr.rel (%p387) target = $region44
      $region43: #{_lambda_.2} parent=5 // pred_region
        %s390 = ssub.s32 %s9, 2
        // Predicated region
        $region45: #{_lambda_.2} parent=43 // pred_check
          %p391 = pneg %p110
        $region46: #{_lambda_.2} parent=43 // pred_check_branch
          %393 = sbr.rel (%p391) target = $region48
        $region47: #{_lambda_.2} parent=43 // pred_region
          %p394 = scmp.lt.s32.totalorder %s22, 1
          %s395 = scalar_select %p394, %s22, 1
          %p396 = scmp.lt.s32.totalorder %s23, 0
          %s397 = scalar_select %p396, %s23, 0
          %s398 = smul.addr %s397, 4
          %s399 = smul.addr %s395, 4
          %s400 = sadd.s32 %s398, %s399
          %s401 = smul.addr %s400, 8
          %s402 = scalar_lea.vmem %s2, %s401
        $region48: #{_lambda_.2} parent=43 // pred_fallthru
          _
      $region44: #{_lambda_.2} parent=5 // pred_fallthru
        _
    $region6: #{_lambda_.2} parent=1 // loop_footer
      %s13 = sadd.s32 1, %s9
    $region7: #{_lambda_.2} parent=1 // loop_footer_branch
      %8 = sbr.rel target = $region3
    $region8: #{_lambda_.2} parent=1 // loop_exit
      _
    %403 = vsyncpa [#allocation3], 1
    %s404 = scalar_lea.sflag [#allocation3], 1
    %405 = vsyncpa %s404, 1

// kernel: _lambda_.3
$region0: #{_lambda_.3}
  #allocation0 [shape = 'u32[]', space=smem, size = 0x4, offset = 0x4, fixed_abs, tag = 'smem constant byte address 0x4 - core index']
  #allocation1 [shape = 'u32[144,128]{1,0:T(1,128)}', space=vmem, size = 0x12000, scoped, tag = 'internal scratch']
  %s0 = inlined_call_operand.vmem [shape: f32[4], index: 0, kind: input, shape index: {}]
  %s1 = inlined_call_operand.vmem [shape: f32[2,3,1,256], index: 1, kind: input, shape index: {}]
  %s2 = inlined_call_operand.vmem [shape: f32[2,1,256], index: 2, kind: output, shape index: {}]
  %s3 = sld [smem:[#allocation0]]
  $region45: #{_lambda_.3} parent=0
    _
  %s5 = ssub.s32 1, %s3
  %s6 = scalar_select 0, %s5, %s3
  $region1: #{_lambda_.3} parent=0
    #allocation2 [shape = 'u8[512]{0}', space=smem, size = 0x200, scoped, tag = 'input window, operand 0, single buffered']
    #allocation3 [shape = 's32[2]{0}', space=sflag, size = 0x8, scoped, tag = 'scoped memory for _lambda_.3']
    %7 = vsyncpa [#allocation3], 0
    loop: start=0, step=1, limit=4
    $region2: #{_lambda_.3} parent=1 // loop_pre_header
      _
    $region3: #{_lambda_.3} parent=1 // loop_header
      %s9 = sphi 0, %s13
      %p10 = scmp.ge.s32.totalorder %s9, 4
      %s16 = sphi 0, %s28
      %s17 = sphi 0, %s24
      %s18 = sphi 0, %s16
      %s19 = sphi 0, %s17
      %s20 = sphi 0, %s18
      %s21 = sphi 0, %s19
      %s29 = sphi 0, %s29
      %s31 = sphi 0, %s29
      %s32 = sphi 0, %s31
      %s46 = sphi 0, %s32
      %s54 = sphi 0, %s56
      %s57 = sphi 0, %s54
      %s58 = sphi 0, %s57
      %s74 = sphi 0, %s58
      %s82 = sphi 0, %s84
      %s85 = sphi 0, %s82
      %s86 = sphi 0, %s85
      %s102 = sphi 0, %s86
    $region4: #{_lambda_.3} parent=1 // loop_header_branch
      %12 = sbr.rel (%p10) target = $region8
    $region5: #{_lambda_.3} parent=1 // loop_body
      %s14 = ssub.s32 %s9, 1
      %s15 = ssub.s32 %s9, 2
      %s22 = sadd.s32 1, %s17
      %p23 = scmp.ge.s32.totalorder %s22, 1
      %s24 = scalar_select %p23, 0, %s22
      %s25 = sadd.s32 1, %s16
      %s26 = scalar_select %p23, %s25, %s16
      %p27 = scmp.ge.s32.totalorder %s26, 2
      %s28 = scalar_select %p27, 0, %s26
      %s30 = sadd.s32 %s29, 1
      %p33 = scmp.eq.s32.totalorder %s9, 1
      %p34 = scmp.ne.s32.totalorder %s29, %s31
      %p35 = scmp.eq.s32.totalorder %s9, 0
      %p36 = por %p34, %p35
      %p37 = scmp.ne.s32.totalorder %s29, %s31
      %p38 = scmp.eq.s32.totalorder %s14, 1
      %p39 = por %p37, %p38
      %p40 = scmp.ne.s32.totalorder %s31, %s32
      %p41 = scmp.eq.s32.totalorder %s14, 0
      %p42 = por %p40, %p41
      %p43 = scmp.ne.s32.totalorder %s31, %s32
      %p44 = scmp.eq.s32.totalorder %s15, 1
      %p45 = por %p43, %p44
      %p47 = scmp.ne.s32.totalorder %s32, %s46
      %p48 = scmp.eq.s32.totalorder %s15, 0
      %p49 = por %p47, %p48
      %s50 = ssub.s32 %s16, %s28
      %s51 = ssub.s32 %s17, %s24
      %s52 = sor.u32 %s50, %s51
      %p53 = scmp.eq.s32.totalorder %s52, 0
      %s55 = sadd.s32 %s54, 1
      %s56 = scalar_select %p53, %s54, %s55
      %p59 = pneg %p53
      %p60 = scmp.eq.s32.totalorder %s9, 1
      %p61 = por %p59, %p60
      %p62 = scmp.ne.s32.totalorder %s54, %s57
      %p63 = scmp.eq.s32.totalorder %s9, 0
      %p64 = por %p62, %p63
      %p65 = scmp.ne.s32.totalorder %s54, %s57
      %p66 = scmp.eq.s32.totalorder %s14, 1
      %p67 = por %p65, %p66
      %p68 = scmp.ne.s32.totalorder %s57, %s58
      %p69 = scmp.eq.s32.totalorder %s14, 0
      %p70 = por %p68, %p69
      %p71 = scmp.ne.s32.totalorder %s57, %s58
      %p72 = scmp.eq.s32.totalorder %s15, 1
      %p73 = por %p71, %p72
      %p75 = scmp.ne.s32.totalorder %s58, %s74
      %p76 = scmp.eq.s32.totalorder %s15, 0
      %p77 = por %p75, %p76
      %s78 = ssub.s32 %s16, %s28
      %s79 = ssub.s32 %s17, %s24
      %s80 = sor.u32 %s78, %s79
      %p81 = scmp.eq.s32.totalorder %s80, 0
      %s83 = sadd.s32 %s82, 1
      %s84 = scalar_select %p81, %s82, %s83
      %p87 = pneg %p81
      %p88 = scmp.eq.s32.totalorder %s9, 1
      %p89 = por %p87, %p88
      %p90 = scmp.ne.s32.totalorder %s82, %s85
      %p91 = scmp.eq.s32.totalorder %s9, 0
      %p92 = por %p90, %p91
      %p93 = scmp.ne.s32.totalorder %s82, %s85
      %p94 = scmp.eq.s32.totalorder %s14, 1
      %p95 = por %p93, %p94
      %p96 = scmp.ne.s32.totalorder %s85, %s86
      %p97 = scmp.eq.s32.totalorder %s14, 0
      %p98 = por %p96, %p97
      %p99 = scmp.ne.s32.totalorder %s85, %s86
      %p100 = scmp.eq.s32.totalorder %s15, 1
      %p101 = por %p99, %p100
      %p103 = scmp.ne.s32.totalorder %s86, %s102
      %p104 = scmp.eq.s32.totalorder %s15, 0
      %p105 = por %p103, %p104
      %p106 = scmp.le.s32.totalorder 1, %s9
      %p107 = scmp.lt.s32.totalorder %s9, 3
      %p108 = pnand %p106, %p107
      %p109 = pneg %p108
      // Predicated region
      $region9: #{_lambda_.3} parent=5 // pred_check
        _
      $region10: #{_lambda_.3} parent=5 // pred_check_branch
        %111 = sbr.rel (%p108) target = $region12
      $region11: #{_lambda_.3} parent=5 // pred_region
        %s112 = ssub.s32 %s9, 1
        // Predicated region
        $region13: #{_lambda_.3} parent=11 // pred_check
          %p113 = pneg %p42
        $region14: #{_lambda_.3} parent=11 // pred_check_branch
          %115 = sbr.rel (%p113) target = $region16
        $region15: #{_lambda_.3} parent=11 // pred_region
          %s117 = ssub.s32 16, 16
          %118 = vsyncadd [#allocation3], %s117
          %s120 = sshll.u32 %s0, 4
          %s121 = int_to_ptr.vmem [resolvable:$true] %s120
          %123 = dma.vmem_to_smem %s121, 16, [#allocation2], [#allocation3]
        $region16: #{_lambda_.3} parent=11 // pred_fallthru
          _
      $region12: #{_lambda_.3} parent=5 // pred_fallthru
        _
      %p124 = scmp.lt.s32.totalorder %s9, 2
      // Predicated region
      $region17: #{_lambda_.3} parent=5 // pred_check
        %p125 = pneg %p124
      $region18: #{_lambda_.3} parent=5 // pred_check_branch
        %127 = sbr.rel (%p125) target = $region20
      $region19: #{_lambda_.3} parent=5 // pred_region
        // Predicated region
        $region21: #{_lambda_.3} parent=19 // pred_check
          %p128 = pneg %p64
        $region22: #{_lambda_.3} parent=19 // pred_check_branch
          %130 = sbr.rel (%p128) target = $region24
        $region23: #{_lambda_.3} parent=19 // pred_region
          %p131 = scmp.lt.s32.totalorder %s16, 1
          %s132 = scalar_select %p131, %s16, 1
          %p133 = scmp.lt.s32.totalorder %s17, 0
          %s134 = scalar_select %p133, %s17, 0
          %s135 = smul.addr %s134, 2
          %s136 = smul.addr %s132, 6
          %s137 = sadd.s32 %s135, %s136
          %s138 = scalar_lea.vmem %s1, %s137
        $region24: #{_lambda_.3} parent=19 // pred_fallthru
          _
      $region20: #{_lambda_.3} parent=5 // pred_fallthru
        _
      %p139 = scmp.le.s32.totalorder 1, %s9
      %p140 = scmp.lt.s32.totalorder %s9, 3
      %p141 = pnand %p139, %p140
      %p142 = pneg %p141
      // Predicated region
      $region25: #{_lambda_.3} parent=5 // pred_check
        _
      $region26: #{_lambda_.3} parent=5 // pred_check_branch
        %144 = sbr.rel (%p141) target = $region28
      $region27: #{_lambda_.3} parent=5 // pred_region
        %s145 = ssub.s32 %s9, 1
        // Predicated region
        $region29: #{_lambda_.3} parent=27 // pred_check
          %p146 = pneg %p42
        $region30: #{_lambda_.3} parent=27 // pred_check_branch
          %148 = sbr.rel (%p146) target = $region32
        $region31: #{_lambda_.3} parent=27 // pred_region
          %149 = dma.done [#allocation3], 16
        $region32: #{_lambda_.3} parent=27 // pred_fallthru
          _
        %150 = sfence
        %p151 = pneg %p42
        %p152 = pneg %p39
        %p153 = scmp.lt.s32.totalorder %s18, 1
        %s154 = scalar_select %p153, %s18, 1
        %p155 = scmp.lt.s32.totalorder %s19, 0
        %s156 = scalar_select %p155, %s19, 0
        %s157 = smul.addr %s156, 2
        %s158 = smul.addr %s154, 6
        %s159 = sadd.s32 %s157, %s158
        %s160 = scalar_lea.vmem %s1, %s159
        %p161 = pneg %p70
        %p162 = pneg %p67
        %p163 = pneg %p98
        %p164 = pneg %p95
        %p165 = scmp.lt.s32.totalorder %s18, 1
        %s166 = scalar_select %p165, %s18, 1
        %p167 = scmp.lt.s32.totalorder %s19, 0
        %s168 = scalar_select %p167, %s19, 0
        %s169 = smul.addr %s168, 2
        %s170 = smul.addr %s166, 2
        %s171 = sadd.s32 %s169, %s170
        %s172 = scalar_lea.vmem %s2, %s171
        %p173 = scmp.lt.s32.totalorder %s18, 1
        %s174 = scalar_select %p173, %s18, 1
        %p175 = scmp.lt.s32.totalorder %s19, 0
        %s176 = scalar_select %p175, %s19, 0
        %s177 = smul.addr %s176, 2
        %s178 = smul.addr %s174, 6
        %s179 = sadd.s32 %s177, %s178
        %s180 = scalar_lea.vmem %s1, %s179
        %p181 = scmp.lt.s32.totalorder %s18, 1
        %s182 = scalar_select %p181, %s18, 1
        %p183 = scmp.lt.s32.totalorder %s19, 0
        %s184 = scalar_select %p183, %s19, 0
        %s185 = smul.addr %s184, 2
        %s186 = smul.addr %s182, 2
        %s187 = sadd.s32 %s185, %s186
        %s188 = scalar_lea.vmem %s2, %s187
        %s189 = sld [smem:[#allocation2]]
        %s190 = sld [smem:[#allocation2 + $0x1]]
        %s191 = sld [smem:[#allocation2 + $0x2]]
        %s192 = sld [smem:[#allocation2 + $0x3]]
        %v193 = vld [vmem:[%s180] sm:$0x3]
        %v194 = vstv %s189
        %v195 = vmul.f32 %v194, %v193
        %s196 = scalar_lea.vmem %s180, 2
        %v197 = vld [vmem:[%s196] sm:$0x3]
        %v198 = vstv %s190
        %v199 = vmul.f32 %v198, %v197
        %v200 = vadd.f32 %v195, %v199
        %s201 = scalar_lea.vmem %s180, 4
        %v202 = vld [vmem:[%s201] sm:$0x3]
        %v203 = vstv %s191
        %v204 = vmul.f32 %v203, %v202
        %v205 = vadd.f32 %v200, %v204
        %v206 = vstv %s192
        %v207 = vadd.f32 %v205, %v206
        %v208 = vmul.f32 %v207, 0.5
        %v209 = vtanh.pop %v208
        %v210 = vmul.f32 %v209, 0.5
        %v211 = vadd.f32 %v210, 0.5
        %v212 = vlaneseq
        %vm213 = vcmp.ge.s32.totalorder %v212, 0
        %vm214 = vcmp.lt.s32.totalorder %v212, 256
        %vm215 = vmand %vm213, %vm214
        %216 = vst.msk [vmem:[%s188] sm:$0x3] %vm215, %v211
        %p217 = scmp.lt.s32.totalorder %s18, 1
        %s218 = scalar_select %p217, %s18, 1
        %p219 = scmp.lt.s32.totalorder %s19, 0
        %s220 = scalar_select %p219, %s19, 0
        %s221 = smul.addr %s220, 2
        %s222 = smul.addr %s218, 2
        %s223 = sadd.s32 %s221, %s222
        %s224 = scalar_lea.vmem %s2, %s223
        // Predicated region
        $region33: #{_lambda_.3} parent=27 // pred_check
          %p225 = pneg %p95
        $region34: #{_lambda_.3} parent=27 // pred_check_branch
          %227 = sbr.rel (%p225) target = $region36
        $region35: #{_lambda_.3} parent=27 // pred_region
          _
        $region36: #{_lambda_.3} parent=27 // pred_fallthru
          _
      $region28: #{_lambda_.3} parent=5 // pred_fallthru
        _
      %p228 = scmp.le.s32.totalorder 2, %s9
      // Predicated region
      $region37: #{_lambda_.3} parent=5 // pred_check
        %p229 = pneg %p228
      $region38: #{_lambda_.3} parent=5 // pred_check_branch
        %231 = sbr.rel (%p229) target = $region40
      $region39: #{_lambda_.3} parent=5 // pred_region
        %s232 = ssub.s32 %s9, 2
        // Predicated region
        $region41: #{_lambda_.3} parent=39 // pred_check
          %p233 = pneg %p101
        $region42: #{_lambda_.3} parent=39 // pred_check_branch
          %235 = sbr.rel (%p233) target = $region44
        $region43: #{_lambda_.3} parent=39 // pred_region
          %p236 = scmp.lt.s32.totalorder %s20, 1
          %s237 = scalar_select %p236, %s20, 1
          %p238 = scmp.lt.s32.totalorder %s21, 0
          %s239 = scalar_select %p238, %s21, 0
          %s240 = smul.addr %s239, 2
          %s241 = smul.addr %s237, 2
          %s242 = sadd.s32 %s240, %s241
          %s243 = scalar_lea.vmem %s2, %s242
        $region44: #{_lambda_.3} parent=39 // pred_fallthru
          _
      $region40: #{_lambda_.3} parent=5 // pred_fallthru
        _
    $region6: #{_lambda_.3} parent=1 // loop_footer
      %s13 = sadd.s32 1, %s9
    $region7: #{_lambda_.3} parent=1 // loop_footer_branch
      %8 = sbr.rel target = $region3
    $region8: #{_lambda_.3} parent=1 // loop_exit
      _
    %244 = vsyncpa [#allocation3], 1
    %s245 = scalar_lea.sflag [#allocation3], 1
    %246 = vsyncpa %s245, 1

</llo_original>
